<compile_context>
chip_gen: v6e
topology: v6e:2x2x1
jax: 0.10.0
libtpu: 0.0.40
codegen_flags: <defaults>
</compile_context>

<pallas_src>
import functools

import jax
import jax.numpy as jnp
from jax.experimental import pallas as pl
from jax.experimental.pallas import tpu as pltpu

HIDDEN = 128
_SUBLANE = 8


def _round_up(x, m):
    return (x + m - 1) // m * m


def _cdiv(a, b):
    return (a + b - 1) // b


# ---------------------------------------------------------------------------
# Kernel body: one batch tile per grid step, both matmuls fused, f32 accumulation.
# ---------------------------------------------------------------------------
def mlp_kernel(x_ref, w1_ref, b1_ref, w2_ref, b2_ref, o_ref):
    # Cast x to the weight (compute) dtype in registers -- saves a whole wrapper-side
    # HBM pad/cast pass.  MXU accumulates in f32 via preferred_element_type.
    x = x_ref[...].astype(w1_ref.dtype)
    h = jnp.dot(x, w1_ref[...], preferred_element_type=jnp.float32)
    h = jnp.maximum(h + b1_ref[...], 0.0)                 # bias (1,128) broadcasts; ReLU on VPU
    out = jnp.dot(h.astype(w2_ref.dtype), w2_ref[...],
                  preferred_element_type=jnp.float32)
    o_ref[...] = (out + b2_ref[...]).astype(o_ref.dtype)  # bias add in f32, then downcast


# ---------------------------------------------------------------------------
# One-time probe: does this JAX build accept pl.Buffered(1) (single-buffered,
# grid-invariant operands)?  Falls back to default double buffering if not.
# ---------------------------------------------------------------------------
_SINGLE_BUFFER_MODE = None  # None = not probed yet; (mode_or_None,) once probed


def _probe_copy_kernel(x_ref, o_ref):
    o_ref[...] = x_ref[...]


def _single_buffer_mode():
    global _SINGLE_BUFFER_MODE
    if _SINGLE_BUFFER_MODE is not None:
        return _SINGLE_BUFFER_MODE[0]
    try:
        mode = pl.Buffered(1)
        probe = pl.pallas_call(
            _probe_copy_kernel,
            out_shape=jax.ShapeDtypeStruct((_SUBLANE, 128), jnp.float32),
            grid=(2,),
            in_specs=[pl.BlockSpec((_SUBLANE, 128), lambda i: (0, 0), pipeline_mode=mode)],
            out_specs=pl.BlockSpec((_SUBLANE, 128), lambda i: (0, 0)),
        )
        jax.block_until_ready(probe(jnp.zeros((_SUBLANE, 128), jnp.float32)))
        _SINGLE_BUFFER_MODE = (mode,)
    except Exception:
        _SINGLE_BUFFER_MODE = (None,)
    return _SINGLE_BUFFER_MODE[0]


def _invariant_spec(block_shape, mode):
    """BlockSpec for a grid-invariant operand (DMA'd once, resident in VMEM)."""
    if mode is None:
        return pl.BlockSpec(block_shape, lambda i: (0, 0))
    return pl.BlockSpec(block_shape, lambda i: (0, 0), pipeline_mode=mode)


# ---------------------------------------------------------------------------
# Tiling / VMEM budgeting.
# ---------------------------------------------------------------------------
def _vmem_budget_bytes():
    try:
        cap = int(pltpu.get_tpu_info().vmem_capacity_bytes)
    except Exception:
        cap = 64 * 1024 * 1024  # conservative default: v7x has 64 MiB per TensorCore
    # Leave headroom for Mosaic-internal scratch (critical under v7x's 64 MiB).
    return max(cap - 16 * 1024 * 1024, cap // 2)


def _choose_tile(B, D_in, Dh, D_out, tile_m, x_item, c_item, o_item, single_buffered):
    budget = _vmem_budget_bytes()
    wt_bufs = 1 if single_buffered else 2
    fixed = wt_bufs * ((D_in * Dh + Dh * D_out) * c_item + (Dh + D_out) * 4)
    # Per batch row: double-buffered x + out tiles, in-kernel x cast, f32 h and
    # pre-bias out intermediates (budgeted explicitly, they are staged through VMEM).
    per_row = (2 * D_in * x_item + 2 * D_out * o_item
               + D_in * c_item + (Dh + D_out) * 4)
    tm_cap = max(_SUBLANE, ((budget - fixed) // per_row) // _SUBLANE * _SUBLANE)
    # TODO(synk): if even tm=8 does not fit (enormous D_in), add a K grid axis
    # ("arbitrary") with a VMEM f32 accumulator instead of whole-row x / w1 slabs.

    tile_m = min(max(_SUBLANE, _round_up(int(tile_m), _SUBLANE)), tm_cap)
    num_tiles = _cdiv(B, tile_m)
    if B >= 2 * _SUBLANE:
        # Guarantee >=2 (even) batch steps so the "parallel" axis shards across both
        # v7x TensorCores; the ~0.35us per extra grid step is negligible (mem-bound).
        num_tiles = max(num_tiles, 2)
        if num_tiles % 2:
            num_tiles += 1
    if num_tiles <= 1:
        return 1, B  # single full-dim block: always layout-legal, zero padding waste
    tm = _round_up(_cdiv(B, num_tiles), _SUBLANE)  # <=7 rows of edge waste per grid
    num_tiles = _cdiv(B, tm)
    return num_tiles, tm


# ---------------------------------------------------------------------------
# Parameter packing (call once) + forward.
# ---------------------------------------------------------------------------
def prepare_params(w1, b1, w2, b2, compute_dtype=jnp.bfloat16):
    """One-time packing: weights cast to the MXU compute dtype, biases kept f32
    (added on the f32 accumulator) and reshaped to (1, N).  Doing this outside the
    per-call path removes small per-call HBM passes."""
    w1p = jnp.asarray(w1, compute_dtype)
    w2p = jnp.asarray(w2, compute_dtype)
    b1p = jnp.asarray(b1, jnp.float32).reshape(1, -1)
    b2p = jnp.asarray(b2, jnp.float32).reshape(1, -1)
    return w1p, b1p, w2p, b2p


@functools.partial(jax.jit, static_argnames=("tile_m", "out_dtype"))
def mlp_forward(x, w1, b1, w2, b2, *, tile_m=1024, out_dtype=None):
    """x: (B, D_in) any float dtype; w1: (D_in, 128); b1: (1, 128) f32;
    w2: (128, D_out); b2: (1, D_out) f32.  Returns (B, D_out) in out_dtype
    (default: x.dtype)."""
    B, D_in = x.shape
    Dh = w1.shape[1]
    D_out = w2.shape[1]
    out_dt = jnp.dtype(x.dtype if out_dtype is None else out_dtype)

    x_item = jnp.dtype(x.dtype).itemsize
    c_item = jnp.dtype(w1.dtype).itemsize
    o_item = out_dt.itemsize

    sb_mode = _single_buffer_mode()
    num_tiles, tm = _choose_tile(B, D_in, Dh, D_out, tile_m,
                                 x_item, c_item, o_item,
                                 single_buffered=sb_mode is not None)

    wt_bufs = 1 if sb_mode is not None else 2
    footprint = (wt_bufs * ((D_in * Dh + Dh * D_out) * c_item + (Dh + D_out) * 4)
                 + tm * (2 * D_in * x_item + 2 * D_out * o_item
                         + D_in * c_item + (Dh + D_out) * 4))
    vmem_limit = int(min(_vmem_budget_bytes(),
                         max(2 * footprint, 32 * 1024 * 1024)))

    cost = pl.CostEstimate(
        flops=2 * B * (D_in * Dh + Dh * D_out),
        transcendentals=0,
        bytes_accessed=(B * D_in * x_item
                        + (D_in * Dh + Dh * D_out) * c_item
                        + (Dh + D_out) * 4
                        + B * D_out * o_item),
    )

    return pl.pallas_call(
        mlp_kernel,
        out_shape=jax.ShapeDtypeStruct((B, D_out), out_dt),
        grid_spec=pltpu.PrefetchScalarGridSpec(
            num_scalar_prefetch=0,
            grid=(num_tiles,),
            in_specs=[
                pl.BlockSpec((tm, D_in), lambda i: (i, 0)),  # x: streamed over batch
                _invariant_spec((D_in, Dh), sb_mode),        # w1: resident, DMA'd once
                _invariant_spec((1, Dh), sb_mode),           # b1
                _invariant_spec((Dh, D_out), sb_mode),       # w2: resident
                _invariant_spec((1, D_out), sb_mode),        # b2
            ],
            out_specs=pl.BlockSpec((tm, D_out), lambda i: (i, 0)),
        ),
        compiler_params=pltpu.CompilerParams(
            dimension_semantics=("parallel",),  # batch steps shard across v7x's 2 TCs
            vmem_limit_bytes=vmem_limit,
        ),
        cost_estimate=cost,
    )(x, w1, b1, w2, b2)


def init_params(key, input_dim, out_dim):
    """Deterministic init mimicking nn.Linear's uniform(-1/sqrt(fan_in), 1/sqrt(fan_in))."""
    k1, k2, k3, k4 = jax.random.split(key, 4)
    lim1 = 1.0 / jnp.sqrt(input_dim)
    lim2 = 1.0 / jnp.sqrt(HIDDEN)
    w1 = jax.random.uniform(k1, (input_dim, HIDDEN), jnp.float32, -lim1, lim1)
    b1 = jax.random.uniform(k2, (HIDDEN,), jnp.float32, -lim1, lim1)
    w2 = jax.random.uniform(k3, (HIDDEN, out_dim), jnp.float32, -lim2, lim2)
    b2 = jax.random.uniform(k4, (out_dim,), jnp.float32, -lim2, lim2)
    return w1, b1, w2, b2


if __name__ == "__main__":
    batch, input_dim, out_dim = 8, 32, 16

    key = jax.random.PRNGKey(0)
    kx, kp = jax.random.split(key)
    x = jax.random.normal(kx, (batch, input_dim), jnp.float32)
    w1, b1, w2, b2 = init_params(kp, input_dim, out_dim)

    ref = jnp.maximum(x @ w1 + b1, 0.0) @ w2 + b2

    # 1) Exact-math path: f32 weights on the MXU, tight tolerance.
    p32 = prepare_params(w1, b1, w2, b2, compute_dtype=jnp.float32)
    out_f32 = jax.block_until_ready(mlp_forward(x, *p32))
    assert out_f32.shape == (batch, out_dim)
    assert jnp.allclose(out_f32, ref, atol=1e-5, rtol=1e-5), "f32 mismatch vs reference"

    # 2) Default fast path: bf16 weights, in-kernel bf16 cast of x, f32 accumulation,
    #    caller-chosen bf16 output dtype (looser tolerance).
    pbf = prepare_params(w1, b1, w2, b2)  # bf16 compute
    out_bf = jax.block_until_ready(mlp_forward(x, *pbf, out_dtype=jnp.bfloat16))
    assert out_bf.shape == (batch, out_dim) and out_bf.dtype == jnp.bfloat16
    assert jnp.allclose(out_bf.astype(jnp.float32), ref, atol=5e-2, rtol=5e-2), \
        "bf16 mismatch vs reference"

    # 3) Multi-tile grid: even number of batch steps (both v7x TCs busy), exact division.
    B2 = 384
    x2 = jax.random.normal(jax.random.PRNGKey(1), (B2, input_dim), jnp.float32)
    ref2 = jnp.maximum(x2 @ w1 + b1, 0.0) @ w2 + b2
    out2 = jax.block_until_ready(mlp_forward(x2, *p32, tile_m=128))
    assert out2.shape == (B2, out_dim)
    assert jnp.allclose(out2, ref2, atol=1e-5, rtol=1e-5), "tiled mismatch vs reference"

    # 4) Different geometry: non-128-multiple D_in/D_out streamed unpadded.
    in3, out3, B3 = 200, 24, 64
    w1b, b1b, w2b, b2b = init_params(jax.random.PRNGKey(2), in3, out3)
    x3 = jax.random.normal(jax.random.PRNGKey(3), (B3, in3), jnp.float32)
    ref3 = jnp.maximum(x3 @ w1b + b1b, 0.0) @ w2b + b2b
    p3 = prepare_params(w1b, b1b, w2b, b2b, compute_dtype=jnp.float32)
    out3_arr = jax.block_until_ready(mlp_forward(x3, *p3, tile_m=32))
    assert out3_arr.shape == (B3, out3)
    assert jnp.allclose(out3_arr, ref3, atol=2e-2, rtol=2e-2), "geometry-2 mismatch"

    print("KERNEL_OK")
</pallas_src>

<mosaic_0001>
module attributes {stable_mosaic.version = 11 : i64} {
  func.func @mlp_kernel(%arg0: i32, %arg1: memref<8x32xf32, #tpu.memory_space<vmem>>, %arg2: memref<32x128xf32, #tpu.memory_space<vmem>>, %arg3: memref<1x128xf32, #tpu.memory_space<vmem>>, %arg4: memref<128x16xf32, #tpu.memory_space<vmem>>, %arg5: memref<1x16xf32, #tpu.memory_space<vmem>>, %arg6: memref<8x16xf32, #tpu.memory_space<vmem>>) attributes {dimension_semantics = [#tpu.dimension_semantics<parallel>], iteration_bounds = array<i64: 1>, scalar_prefetch = 0 : i64, scratch_operands = 0 : i64, tpu.core_type = #tpu.core_type<tc>, window_params = [{transform_indices = @transform_0, window_bounds = array<i64: 8, 32>}, {pipeline_mode = #tpu.pipeline_mode<synchronous>, transform_indices = @transform_1, window_bounds = array<i64: 32, 128>}, {pipeline_mode = #tpu.pipeline_mode<synchronous>, transform_indices = @transform_2, window_bounds = array<i64: 1, 128>}, {pipeline_mode = #tpu.pipeline_mode<synchronous>, transform_indices = @transform_3, window_bounds = array<i64: 128, 16>}, {pipeline_mode = #tpu.pipeline_mode<synchronous>, transform_indices = @transform_4, window_bounds = array<i64: 1, 16>}, {transform_indices = @transform_5, window_bounds = array<i64: 8, 16>}]} {
    %c0 = arith.constant 0 : index
    %c0_0 = arith.constant 0 : index
    %0 = vector.load %arg1[%c0, %c0_0] : memref<8x32xf32, #tpu.memory_space<vmem>>, vector<8x32xf32>
    %c0_1 = arith.constant 0 : index
    %c0_2 = arith.constant 0 : index
    %1 = vector.load %arg2[%c0_1, %c0_2] : memref<32x128xf32, #tpu.memory_space<vmem>>, vector<32x128xf32>
    %cst = arith.constant dense<0.000000e+00> : vector<8x128xf32>
    %2 = tpu.matmul %0, %1, %cst {dimension_numbers = #tpu.dot_dimension_numbers<[1], [0], [0], [1], [0, 0, 1, 1], [], []>} : vector<8x32xf32>, vector<32x128xf32>, vector<8x128xf32> -> vector<8x128xf32>
    %c0_3 = arith.constant 0 : index
    %c0_4 = arith.constant 0 : index
    %3 = vector.load %arg3[%c0_3, %c0_4] : memref<1x128xf32, #tpu.memory_space<vmem>>, vector<1x128xf32>
    %4 = vector.broadcast %3 : vector<1x128xf32> to vector<8x128xf32>
    %5 = arith.addf %2, %4 : vector<8x128xf32>
    %cst_5 = arith.constant 0.000000e+00 : f32
    %6 = vector.broadcast %cst_5 : f32 to vector<8x128xf32>
    %7 = arith.maximumf %5, %6 : vector<8x128xf32>
    %c0_6 = arith.constant 0 : index
    %c0_7 = arith.constant 0 : index
    %8 = vector.load %arg4[%c0_6, %c0_7] : memref<128x16xf32, #tpu.memory_space<vmem>>, vector<128x16xf32>
    %cst_8 = arith.constant dense<0.000000e+00> : vector<8x16xf32>
    %9 = tpu.matmul %7, %8, %cst_8 {dimension_numbers = #tpu.dot_dimension_numbers<[1], [0], [0], [1], [0, 0, 1, 1], [], []>} : vector<8x128xf32>, vector<128x16xf32>, vector<8x16xf32> -> vector<8x16xf32>
    %c0_9 = arith.constant 0 : index
    %c0_10 = arith.constant 0 : index
    %10 = vector.load %arg5[%c0_9, %c0_10] : memref<1x16xf32, #tpu.memory_space<vmem>>, vector<1x16xf32>
    %11 = vector.broadcast %10 : vector<1x16xf32> to vector<8x16xf32>
    %12 = arith.addf %9, %11 : vector<8x16xf32>
    %c0_11 = arith.constant 0 : index
    %c0_12 = arith.constant 0 : index
    %13 = vector.load %arg6[%c0_11, %c0_12] : memref<8x16xf32, #tpu.memory_space<vmem>>, vector<8x16xf32>
    tpu.vector_store %arg6[%c0_11, %c0_12], %12 {strides = array<i32>} : memref<8x16xf32, #tpu.memory_space<vmem>>, vector<8x16xf32>,
    return
  }
  func.func @transform_0(%arg0: i32) -> (i32, i32) {
    %c0_i32 = arith.constant 0 : i32
    %c0_i32_0 = arith.constant 0 : i32
    return %arg0, %c0_i32 : i32, i32
  }
  func.func @transform_1(%arg0: i32) -> (i32, i32) {
    %c0_i32 = arith.constant 0 : i32
    %c0_i32_0 = arith.constant 0 : i32
    %c0_i32_1 = arith.constant 0 : i32
    return %c0_i32, %c0_i32_0 : i32, i32
  }
  func.func @transform_2(%arg0: i32) -> (i32, i32) {
    %c0_i32 = arith.constant 0 : i32
    %c0_i32_0 = arith.constant 0 : i32
    %c0_i32_1 = arith.constant 0 : i32
    return %c0_i32, %c0_i32_0 : i32, i32
  }
  func.func @transform_3(%arg0: i32) -> (i32, i32) {
    %c0_i32 = arith.constant 0 : i32
    %c0_i32_0 = arith.constant 0 : i32
    %c0_i32_1 = arith.constant 0 : i32
    return %c0_i32, %c0_i32_0 : i32, i32
  }
  func.func @transform_4(%arg0: i32) -> (i32, i32) {
    %c0_i32 = arith.constant 0 : i32
    %c0_i32_0 = arith.constant 0 : i32
    %c0_i32_1 = arith.constant 0 : i32
    return %c0_i32, %c0_i32_0 : i32, i32
  }
  func.func @transform_5(%arg0: i32) -> (i32, i32) {
    %c0_i32 = arith.constant 0 : i32
    %c0_i32_0 = arith.constant 0 : i32
    return %arg0, %c0_i32 : i32, i32
  }
}

</mosaic_0001>

<llo_original>
// kernel: mlp_forward.1
$region0: #{mlp_forward.1}
  #allocation0 [shape = 'u32[]', space=smem, size = 0x4, offset = 0x4, fixed_abs, tag = 'smem constant byte address 0x4 - core index']
  #allocation1 [shape = 'u32[144,128]{1,0:T(1,128)}', space=vmem, size = 0x12000, scoped, tag = 'internal scratch']
  %s0 = inlined_call_operand.vmem [shape: f32[8,32], index: 0, kind: input, shape index: {}]
  %s1 = inlined_call_operand.vmem [shape: f32[32,128], index: 1, kind: input, shape index: {}]
  %s2 = inlined_call_operand.vmem [shape: f32[1,128], index: 2, kind: input, shape index: {}]
  %s3 = inlined_call_operand.vmem [shape: f32[128,16], index: 3, kind: input, shape index: {}]
  %s4 = inlined_call_operand.vmem [shape: f32[1,16], index: 4, kind: input, shape index: {}]
  %s5 = inlined_call_operand.hbm [shape: f32[8,16], index: 5, kind: output, shape index: {}]
  %s6 = sld [smem:[#allocation0]]
  $region30: #{mlp_forward.1} parent=0
    _
  %s8 = ssub.s32 1, %s6
  %s9 = scalar_select 0, %s8, %s6
  $region1: #{mlp_forward.1} parent=0
    #allocation2 [shape = 'u8[4096]{0}', space=vmem, size = 0x1000, scoped, tag = 'output window, operand 0, single buffered']
    #allocation3 [shape = 's32[1]{0}', space=sflag, size = 0x4, scoped, tag = 'scoped memory for mlp_forward.1']
    %10 = vsyncpa [#allocation3], 0
    // Predicated region
    $region2: #{mlp_forward.1} parent=1 // pred_check
      _
    $region3: #{mlp_forward.1} parent=1 // pred_check_branch
      %12 = sbr.rel (0) target = $region5
    $region4: #{mlp_forward.1} parent=1 // pred_region
      _
    $region5: #{mlp_forward.1} parent=1 // pred_fallthru
      _
    // Predicated region
    $region6: #{mlp_forward.1} parent=1 // pred_check
      _
    $region7: #{mlp_forward.1} parent=1 // pred_check_branch
      %14 = sbr.rel (0) target = $region9
    $region8: #{mlp_forward.1} parent=1 // pred_region
      _
    $region9: #{mlp_forward.1} parent=1 // pred_fallthru
      _
    // Predicated region
    $region10: #{mlp_forward.1} parent=1 // pred_check
      _
    $region11: #{mlp_forward.1} parent=1 // pred_check_branch
      %16 = sbr.rel (0) target = $region13
    $region12: #{mlp_forward.1} parent=1 // pred_region
      _
    $region13: #{mlp_forward.1} parent=1 // pred_fallthru
      _
    // Predicated region
    $region14: #{mlp_forward.1} parent=1 // pred_check
      _
    $region15: #{mlp_forward.1} parent=1 // pred_check_branch
      %18 = sbr.rel (0) target = $region17
    $region16: #{mlp_forward.1} parent=1 // pred_region
      _
    $region17: #{mlp_forward.1} parent=1 // pred_fallthru
      _
    // Predicated region
    $region18: #{mlp_forward.1} parent=1 // pred_check
      _
    $region19: #{mlp_forward.1} parent=1 // pred_check_branch
      %20 = sbr.rel (0) target = $region21
    $region20: #{mlp_forward.1} parent=1 // pred_region
      _
    $region21: #{mlp_forward.1} parent=1 // pred_fallthru
      _
    %v21 = vld [vmem:[%s0] sm:$0xff]
    %v22 = vld [vmem:[%s1] sm:$0xff]
    %v23 = vld [vmem:[%s1 + $0x8] sm:$0xff]
    %v24 = vld [vmem:[%s1 + $0x10] sm:$0xff]
    %v25 = vld [vmem:[%s1 + $0x18] sm:$0xff]
    %v26 = vld [vmem:[%s2] sm:$0x1]
    %v28 = vlaneseq
    %v29 = vshrl.u32 %v28, 7
    %v30 = vsub.s32 0, %v29
    %v31 = vrot.slane %v26, %v30
    %vm33 = vcmask 261120
    %v35 = vsel %vm33, %v21, 0
    %37 = vmatprep.subr.mxu0 0.0
    %38 = vmatpush1.msra.mxu0 0.0
    %39 = vmatprep.subr.mxu0 0.0
    %40 = vmatpush1.msra.mxu0 0.0
    %41 = vmatprep.subr.mxu0 0.0
    %42 = vmatpush1.msra.mxu0 0.0
    %43 = vmatprep.subr.mxu0 0.0
    %44 = vmatpush1.msra.mxu0 0.0
    %45 = vmatprep.subr.mxu0 0.0
    %46 = vmatpush1.msra.mxu0 0.0
    %47 = vmatprep.subr.mxu0 0.0
    %48 = vmatpush1.msra.mxu0 0.0
    %49 = vmatprep.subr.mxu0 0.0
    %50 = vmatpush1.msra.mxu0 0.0
    %51 = vmatprep.subr.mxu0 0.0
    %52 = vmatpush1.msra.mxu0 0.0
    %53 = vmatprep.subr.mxu0 0.0
    %54 = vmatpush1.msra.mxu0 0.0
    %55 = vmatprep.subr.mxu0 0.0
    %56 = vmatpush1.msra.mxu0 0.0
    %57 = vmatprep.subr.mxu0 0.0
    %58 = vmatpush1.msra.mxu0 0.0
    %59 = vmatprep.subr.mxu0 0.0
    %60 = vmatpush1.msra.mxu0 0.0
    %61 = vmatprep.subr.mxu0 0.0
    %62 = vmatpush1.msra.mxu0 %v25
    %63 = vmatprep.subr.mxu0 0.0
    %64 = vmatpush1.msra.mxu0 %v24
    %65 = vmatprep.subr.mxu0 0.0
    %66 = vmatpush1.msra.mxu0 %v23
    %67 = vmatprep.subr.mxu0 0.0
    %68 = vmatpush1.msra.mxu0 %v22
    %69 = vmatprep.subr.mxu0 0.0
    %70 = vmatpush2.msra.mxu0 0.0
    %71 = vmatprep.subr.mxu0 0.0
    %72 = vmatpush2.msra.mxu0 0.0
    %73 = vmatprep.subr.mxu0 0.0
    %74 = vmatpush2.msra.mxu0 0.0
    %75 = vmatprep.subr.mxu0 0.0
    %76 = vmatpush2.msra.mxu0 0.0
    %77 = vmatprep.subr.mxu0 0.0
    %78 = vmatpush2.msra.mxu0 0.0
    %79 = vmatprep.subr.mxu0 0.0
    %80 = vmatpush2.msra.mxu0 0.0
    %81 = vmatprep.subr.mxu0 0.0
    %82 = vmatpush2.msra.mxu0 0.0
    %83 = vmatprep.subr.mxu0 0.0
    %84 = vmatpush2.msra.mxu0 0.0
    %85 = vmatprep.subr.mxu0 0.0
    %86 = vmatpush2.msra.mxu0 0.0
    %87 = vmatprep.subr.mxu0 0.0
    %88 = vmatpush2.msra.mxu0 0.0
    %89 = vmatprep.subr.mxu0 0.0
    %90 = vmatpush2.msra.mxu0 0.0
    %91 = vmatprep.subr.mxu0 0.0
    %92 = vmatpush2.msra.mxu0 0.0
    %93 = vmatprep.subr.mxu0 0.0
    %94 = vmatpush2.msra.mxu0 0.0
    %95 = vmatprep.subr.mxu0 0.0
    %96 = vmatpush2.msra.mxu0 0.0
    %97 = vmatprep.subr.mxu0 0.0
    %98 = vmatpush2.msra.mxu0 0.0
    %99 = vmatprep.subr.mxu0 0.0
    %100 = vmatpush2.msra.mxu0 0.0
    %101 = vmatprep.mubr.f32.mxu0 0.0
    %102 = vmatmul.mubr.f32.gmra.mxu0 %v35
    %v103 = vpop.f32.mrf.mxu0
    %v104 = vadd.f32 %v31, %v103
    %v105 = vpop.f32.mrf.mxu0
    %106 = vdwg.mxu0
    %v107 = vmax.f32 %v104, 0.0
    %v108 = vld [vmem:[%s3] sm:$0xff]
    %v109 = vld [vmem:[%s3 + $0x8] sm:$0xff]
    %v110 = vld [vmem:[%s3 + $0x10] sm:$0xff]
    %v111 = vld [vmem:[%s3 + $0x18] sm:$0xff]
    %v112 = vld [vmem:[%s3 + $0x20] sm:$0xff]
    %v113 = vld [vmem:[%s3 + $0x28] sm:$0xff]
    %v114 = vld [vmem:[%s3 + $0x30] sm:$0xff]
    %v115 = vld [vmem:[%s3 + $0x38] sm:$0xff]
    %v116 = vld [vmem:[%s3 + $0x40] sm:$0xff]
    %v117 = vld [vmem:[%s3 + $0x48] sm:$0xff]
    %v118 = vld [vmem:[%s3 + $0x50] sm:$0xff]
    %v119 = vld [vmem:[%s3 + $0x58] sm:$0xff]
    %v120 = vld [vmem:[%s3 + $0x60] sm:$0xff]
    %v121 = vld [vmem:[%s3 + $0x68] sm:$0xff]
    %v122 = vld [vmem:[%s3 + $0x70] sm:$0xff]
    %v123 = vld [vmem:[%s3 + $0x78] sm:$0xff]
    %v124 = vld [vmem:[%s4] sm:$0x1]
    %v126 = vlaneseq
    %v127 = vshrl.u32 %v126, 7
    %v128 = vsub.s32 0, %v127
    %v129 = vrot.slane %v124, %v128
    %131 = vmatprep.subr.mxu0 0.0
    %132 = vmatpush1.msra.mxu0 %v123
    %133 = vmatprep.subr.mxu0 0.0
    %134 = vmatpush1.msra.mxu0 %v122
    %135 = vmatprep.subr.mxu0 0.0
    %136 = vmatpush1.msra.mxu0 %v121
    %137 = vmatprep.subr.mxu0 0.0
    %138 = vmatpush1.msra.mxu0 %v120
    %139 = vmatprep.subr.mxu0 0.0
    %140 = vmatpush1.msra.mxu0 %v119
    %141 = vmatprep.subr.mxu0 0.0
    %142 = vmatpush1.msra.mxu0 %v118
    %143 = vmatprep.subr.mxu0 0.0
    %144 = vmatpush1.msra.mxu0 %v117
    %145 = vmatprep.subr.mxu0 0.0
    %146 = vmatpush1.msra.mxu0 %v116
    %147 = vmatprep.subr.mxu0 0.0
    %148 = vmatpush1.msra.mxu0 %v115
    %149 = vmatprep.subr.mxu0 0.0
    %150 = vmatpush1.msra.mxu0 %v114
    %151 = vmatprep.subr.mxu0 0.0
    %152 = vmatpush1.msra.mxu0 %v113
    %153 = vmatprep.subr.mxu0 0.0
    %154 = vmatpush1.msra.mxu0 %v112
    %155 = vmatprep.subr.mxu0 0.0
    %156 = vmatpush1.msra.mxu0 %v111
    %157 = vmatprep.subr.mxu0 0.0
    %158 = vmatpush1.msra.mxu0 %v110
    %159 = vmatprep.subr.mxu0 0.0
    %160 = vmatpush1.msra.mxu0 %v109
    %161 = vmatprep.subr.mxu0 0.0
    %162 = vmatpush1.msra.mxu0 %v108
    %163 = vmatprep.subr.mxu0 0.0
    %164 = vmatpush2.msra.mxu0 0.0
    %165 = vmatprep.subr.mxu0 0.0
    %166 = vmatpush2.msra.mxu0 0.0
    %167 = vmatprep.subr.mxu0 0.0
    %168 = vmatpush2.msra.mxu0 0.0
    %169 = vmatprep.subr.mxu0 0.0
    %170 = vmatpush2.msra.mxu0 0.0
    %171 = vmatprep.subr.mxu0 0.0
    %172 = vmatpush2.msra.mxu0 0.0
    %173 = vmatprep.subr.mxu0 0.0
    %174 = vmatpush2.msra.mxu0 0.0
    %175 = vmatprep.subr.mxu0 0.0
    %176 = vmatpush2.msra.mxu0 0.0
    %177 = vmatprep.subr.mxu0 0.0
    %178 = vmatpush2.msra.mxu0 0.0
    %179 = vmatprep.subr.mxu0 0.0
    %180 = vmatpush2.msra.mxu0 0.0
    %181 = vmatprep.subr.mxu0 0.0
    %182 = vmatpush2.msra.mxu0 0.0
    %183 = vmatprep.subr.mxu0 0.0
    %184 = vmatpush2.msra.mxu0 0.0
    %185 = vmatprep.subr.mxu0 0.0
    %186 = vmatpush2.msra.mxu0 0.0
    %187 = vmatprep.subr.mxu0 0.0
    %188 = vmatpush2.msra.mxu0 0.0
    %189 = vmatprep.subr.mxu0 0.0
    %190 = vmatpush2.msra.mxu0 0.0
    %191 = vmatprep.subr.mxu0 0.0
    %192 = vmatpush2.msra.mxu0 0.0
    %193 = vmatprep.subr.mxu0 0.0
    %194 = vmatpush2.msra.mxu0 0.0
    %195 = vmatprep.mubr.f32.mxu0 0.0
    %196 = vmatmul.mubr.f32.gmra.mxu0 %v107
    %v197 = vpop.f32.mrf.mxu0
    %v198 = vadd.f32 %v129, %v197
    %v199 = vpop.f32.mrf.mxu0
    %200 = vdwg.mxu0
    %vm201 = vcmask 130048
    %202 = vst.msk [vmem:[#allocation2] sm:$0xff] %vm201, %v198
    // Predicated region
    $region22: #{mlp_forward.1} parent=1 // pred_check
      _
    $region23: #{mlp_forward.1} parent=1 // pred_check_branch
      %204 = sbr.rel (0) target = $region25
    $region24: #{mlp_forward.1} parent=1 // pred_region
      %s206 = ssub.s32 128, 128
      %207 = vsyncadd [#allocation3], %s206
      %s209 = sshll.u32 [#allocation2], 4
      %s210 = int_to_ptr.vmem [resolvable:$true] %s209
      %212 = dma.vmem_to_hbm [thread:$0]  %s210, 128, %s5, [#allocation3]
    $region25: #{mlp_forward.1} parent=1 // pred_fallthru
      _
    // Predicated region
    $region26: #{mlp_forward.1} parent=1 // pred_check
      _
    $region27: #{mlp_forward.1} parent=1 // pred_check_branch
      %214 = sbr.rel (0) target = $region29
    $region28: #{mlp_forward.1} parent=1 // pred_region
      %215 = dma.done [#allocation3], 128
    $region29: #{mlp_forward.1} parent=1 // pred_fallthru
      _
    %216 = vsyncpa [#allocation3], 1

</llo_original>
